<compile_context>
chip_gen: v7x
topology: tpu7x:2x2x1
jax: 0.10.0
libtpu: 0.0.40
codegen_flags: <defaults>
</compile_context>

<pallas_src>
import jax
import jax.numpy as jnp
from jax.experimental import pallas as pl
from jax.experimental.pallas import tpu as pltpu


def contrastive_kernel(o1_ref, o2_ref, lab_ref, out_ref, acc_ref):
    b_idx = pl.program_id(1)

    @pl.when(b_idx == 0)
    def _():
        acc_ref[...] = jnp.zeros_like(acc_ref)

    # Upcast inside the kernel (free on the VPU) instead of a wrapper-side astype pass.
    o1 = o1_ref[...].astype(jnp.float32)          # (tile_b, tile_d)
    o2 = o2_ref[...].astype(jnp.float32)          # (tile_b, tile_d)
    lab = lab_ref[...].astype(jnp.float32)        # (tile_b, 1), broadcast over lanes

    diff = o1 - o2
    d2 = diff * diff                              # |o1 - o2|^2  == 1 - cos_distance
    # (1 - label) * (1 - cos) + label * cos  ==  (1 - label) * d2 + label * (1 - d2)
    term = (1.0 - lab) * d2 + lab * (1.0 - d2)

    acc_ref[...] += jnp.sum(term, axis=0, keepdims=True)   # sum over batch block

    @pl.when(b_idx == pl.num_programs(1) - 1)
    def _():
        out_ref[...] = acc_ref[...]


def _pick_tile(full, unit, cap):
    """Largest multiple of `unit` that divides `full` and is <= cap; else the full extent."""
    if full % unit != 0:
        return full                    # full-extent block is always legal
    t = min(cap, full)
    t = (t // unit) * unit
    while full % t != 0:
        t -= unit
    return t


def contrastive_loss(output1, output2, label, *, margin=2.0,
                     tile_d_cap=1024, tile_b_cap=256):
    """output1, output2: (B, D) float; label: (B,) or (B, 1). Returns scalar loss."""
    del margin  # unused in forward, matches the PyTorch module
    B, D = output1.shape
    label = jnp.asarray(label).reshape(B, 1).astype(jnp.float32)

    tile_d = _pick_tile(D, 128, tile_d_cap)   # lane axis: wide tiles -> HBM saturation
    tile_b = _pick_tile(B, 8, tile_b_cap)     # sublane axis: bounded VMEM per step

    grid = (D // tile_d, B // tile_b)         # (parallel over D, reduction over B last)

    col_sums = pl.pallas_call(
        contrastive_kernel,
        out_shape=jax.ShapeDtypeStruct((1, D), jnp.float32),
        grid_spec=pltpu.PrefetchScalarGridSpec(
            num_scalar_prefetch=0,
            grid=grid,
            in_specs=[
                pl.BlockSpec((tile_b, tile_d), lambda j, i: (i, j)),
                pl.BlockSpec((tile_b, tile_d), lambda j, i: (i, j)),
                pl.BlockSpec((tile_b, 1), lambda j, i: (i, 0)),
            ],
            out_specs=pl.BlockSpec((1, tile_d), lambda j, i: (0, j)),
            scratch_shapes=[pltpu.VMEM((1, tile_d), jnp.float32)],
        ),
        compiler_params=pltpu.CompilerParams(
            dimension_semantics=("parallel", "arbitrary"),
            vmem_limit_bytes=32 * 1024 * 1024,
        ),
    )(output1, output2, label)

    # Tiny (1, D) -> scalar reduction + mean normalization outside the kernel.
    return jnp.sum(col_sums) / (B * D)


def _reference(output1, output2, label):
    cos_distance = 1.0 - jnp.abs(output1 - output2) ** 2
    lab = jnp.asarray(label).reshape(-1, 1).astype(jnp.float32)
    return jnp.mean((1.0 - lab) * (1.0 - cos_distance) + lab * cos_distance)


if __name__ == "__main__":
    key = jax.random.PRNGKey(0)
    k1, k2, k3 = jax.random.split(key, 3)

    B, D_feat = 32, 512
    output1 = jax.random.uniform(k1, (B, D_feat), jnp.float32, minval=-1.0, maxval=1.0)
    output2 = jax.random.uniform(k2, (B, D_feat), jnp.float32, minval=-1.0, maxval=1.0)
    label = jax.random.randint(k3, (B,), 0, 2).astype(jnp.float32)   # 0 / 1 pair labels

    # Small tiles: exercises the 2-D grid + cross-step accumulator path.
    loss_small = contrastive_loss(output1, output2, label, tile_d_cap=128, tile_b_cap=8)
    # Default (production-sized) tiles.
    loss_big = contrastive_loss(output1, output2, label)
    jax.block_until_ready((loss_small, loss_big))

    ref = _reference(output1, output2, label)
    assert jnp.allclose(loss_small, ref, rtol=1e-5, atol=1e-6), "loss mismatch (small tiles)"
    assert jnp.allclose(loss_big, ref, rtol=1e-5, atol=1e-6), "loss mismatch (default tiles)"

    print("KERNEL_OK")
</pallas_src>

<mosaic_0001>
module attributes {stable_mosaic.version = 11 : i64} {
  func.func @contrastive_kernel(%arg0: i32, %arg1: i32, %arg2: memref<8x128xf32, #tpu.memory_space<vmem>>, %arg3: memref<8x128xf32, #tpu.memory_space<vmem>>, %arg4: memref<8x1xf32, #tpu.memory_space<vmem>>, %arg5: memref<1x128xf32, #tpu.memory_space<vmem>>, %arg6: memref<1x128xf32, #tpu.memory_space<vmem>>) attributes {dimension_semantics = [#tpu.dimension_semantics<parallel>, #tpu.dimension_semantics<arbitrary>], iteration_bounds = array<i64: 4, 4>, scalar_prefetch = 0 : i64, scratch_operands = 1 : i64, tpu.core_type = #tpu.core_type<tc>, window_params = [{transform_indices = @transform_0, window_bounds = array<i64: 8, 128>}, {transform_indices = @transform_1, window_bounds = array<i64: 8, 128>}, {transform_indices = @transform_2, window_bounds = array<i64: 8, 1>}, {transform_indices = @transform_3, window_bounds = array<i64: 1, 128>}]} {
    %c0_i32 = arith.constant 0 : i32
    %0 = arith.cmpi eq, %arg1, %c0_i32 : i32
    %1 = arith.extui %0 : i1 to i32
    %c0_i32_0 = arith.constant 0 : i32
    %2 = arith.cmpi ne, %1, %c0_i32_0 : i32
    scf.if %2 {
      %cst_13 = arith.constant 0.000000e+00 : f32
      %25 = vector.broadcast %cst_13 : f32 to vector<1x128xf32>
      %c0_14 = arith.constant 0 : index
      %c0_15 = arith.constant 0 : index
      %26 = vector.load %arg6[%c0_14, %c0_15] : memref<1x128xf32, #tpu.memory_space<vmem>>, vector<1x128xf32>
      tpu.vector_store %arg6[%c0_14, %c0_15], %25 {strides = array<i32>} : memref<1x128xf32, #tpu.memory_space<vmem>>, vector<1x128xf32>,
    } else {
    }
    %c0 = arith.constant 0 : index
    %c0_1 = arith.constant 0 : index
    %3 = vector.load %arg2[%c0, %c0_1] : memref<8x128xf32, #tpu.memory_space<vmem>>, vector<8x128xf32>
    %c0_2 = arith.constant 0 : index
    %c0_3 = arith.constant 0 : index
    %4 = vector.load %arg3[%c0_2, %c0_3] : memref<8x128xf32, #tpu.memory_space<vmem>>, vector<8x128xf32>
    %c0_4 = arith.constant 0 : index
    %c0_5 = arith.constant 0 : index
    %5 = vector.load %arg4[%c0_4, %c0_5] : memref<8x1xf32, #tpu.memory_space<vmem>>, vector<8x1xf32>
    %6 = arith.subf %3, %4 : vector<8x128xf32>
    %7 = arith.mulf %6, %6 : vector<8x128xf32>
    %cst = arith.constant 1.000000e+00 : f32
    %8 = vector.broadcast %cst : f32 to vector<8x1xf32>
    %9 = arith.subf %8, %5 : vector<8x1xf32>
    %10 = vector.broadcast %9 : vector<8x1xf32> to vector<8x128xf32>
    %11 = arith.mulf %10, %7 : vector<8x128xf32>
    %cst_6 = arith.constant 1.000000e+00 : f32
    %12 = vector.broadcast %cst_6 : f32 to vector<8x128xf32>
    %13 = arith.subf %12, %7 : vector<8x128xf32>
    %14 = vector.broadcast %5 : vector<8x1xf32> to vector<8x128xf32>
    %15 = arith.mulf %14, %13 : vector<8x128xf32>
    %16 = arith.addf %11, %15 : vector<8x128xf32>
    %c0_7 = arith.constant 0 : index
    %c0_8 = arith.constant 0 : index
    %17 = vector.load %arg6[%c0_7, %c0_8] : memref<1x128xf32, #tpu.memory_space<vmem>>, vector<1x128xf32>
    %cst_9 = arith.constant dense<0.000000e+00> : vector<128xf32>
    %18 = vector.multi_reduction <add>, %16, %cst_9 [0] : vector<8x128xf32> to vector<128xf32>
    %19 = vector.shape_cast %18 : vector<128xf32> to vector<1x128xf32>
    %20 = arith.addf %17, %19 : vector<1x128xf32>
    %c0_10 = arith.constant 0 : index
    %c0_11 = arith.constant 0 : index
    %21 = vector.load %arg6[%c0_10, %c0_11] : memref<1x128xf32, #tpu.memory_space<vmem>>, vector<1x128xf32>
    tpu.vector_store %arg6[%c0_10, %c0_11], %20 {strides = array<i32>} : memref<1x128xf32, #tpu.memory_space<vmem>>, vector<1x128xf32>,
    %c3_i32 = arith.constant 3 : i32
    %22 = arith.cmpi eq, %arg1, %c3_i32 : i32
    %23 = arith.extui %22 : i1 to i32
    %c0_i32_12 = arith.constant 0 : i32
    %24 = arith.cmpi ne, %23, %c0_i32_12 : i32
    scf.if %24 {
      %c0_13 = arith.constant 0 : index
      %c0_14 = arith.constant 0 : index
      %25 = vector.load %arg6[%c0_13, %c0_14] : memref<1x128xf32, #tpu.memory_space<vmem>>, vector<1x128xf32>
      %c0_15 = arith.constant 0 : index
      %c0_16 = arith.constant 0 : index
      %26 = vector.load %arg5[%c0_15, %c0_16] : memref<1x128xf32, #tpu.memory_space<vmem>>, vector<1x128xf32>
      tpu.vector_store %arg5[%c0_15, %c0_16], %25 {strides = array<i32>} : memref<1x128xf32, #tpu.memory_space<vmem>>, vector<1x128xf32>,
    } else {
    }
    return
  }
  func.func @transform_0(%arg0: i32, %arg1: i32) -> (i32, i32) {
    %c0_i32 = arith.constant 0 : i32
    return %arg1, %arg0 : i32, i32
  }
  func.func @transform_1(%arg0: i32, %arg1: i32) -> (i32, i32) {
    %c0_i32 = arith.constant 0 : i32
    return %arg1, %arg0 : i32, i32
  }
  func.func @transform_2(%arg0: i32, %arg1: i32) -> (i32, i32) {
    %c0_i32 = arith.constant 0 : i32
    %c0_i32_0 = arith.constant 0 : i32
    return %arg1, %c0_i32 : i32, i32
  }
  func.func @transform_3(%arg0: i32, %arg1: i32) -> (i32, i32) {
    %c0_i32 = arith.constant 0 : i32
    %c0_i32_0 = arith.constant 0 : i32
    return %c0_i32, %arg0 : i32, i32
  }
}

</mosaic_0001>

<llo_original>
// kernel: tpu_custom_call.1
$region0: #{tpu_custom_call.1}
  #allocation0 [shape = 'u32[]', space=smem, size = 0x4, offset = 0x4, fixed_abs, tag = 'smem constant byte address 0x4 - core index']
  #allocation1 [shape = 'u32[144,128]{1,0:T(1,128)}', space=vmem, size = 0x12000, scoped, tag = 'internal scratch']
  #allocation2 [shape = 'f32[1,128]{1,0:T(1,128)}', space=vmem, size = 0x200, scoped, tag = 'scratch operand']
  %s0 = inlined_call_operand.hbm [shape: f32[32,512], index: 0, kind: input, shape index: {}]
  %s1 = inlined_call_operand.hbm [shape: f32[32,512], index: 1, kind: input, shape index: {}]
  %s2 = inlined_call_operand.vmem [shape: f32[32,1], index: 2, kind: input, shape index: {}]
  %s3 = inlined_call_operand.hbm [shape: f32[1,512], index: 3, kind: output, shape index: {}]
  %s4 = sld [smem:[#allocation0]]
  $region61: #{tpu_custom_call.1} parent=0
    _
  %s6 = ssub.s32 1, %s4
  %s7 = scalar_select 0, %s6, %s4
  $region1: #{tpu_custom_call.1} parent=0
    #allocation3 [shape = 'u8[8192]{0}', space=vmem, size = 0x2000, scoped, tag = 'input window, operand 0']
    #allocation4 [shape = 's32[2]{0}', space=sflag, size = 0x8, scoped, tag = 'scoped memory for tpu_custom_call.1']
    #allocation5 [shape = 's32[2]{0}', space=sflag, size = 0x8, scoped, tag = 'scoped memory for tpu_custom_call.1']
    #allocation6 [shape = 'u8[8192]{0}', space=vmem, size = 0x2000, scoped, tag = 'input window, operand 1']
    #allocation7 [shape = 's32[2]{0}', space=sflag, size = 0x8, scoped, tag = 'scoped memory for tpu_custom_call.1']
    #allocation8 [shape = 'u8[1024]{0}', space=vmem, size = 0x400, scoped, tag = 'output window, operand 0']
    %8 = vsyncpa [#allocation4], 0
    %s9 = scalar_lea.sflag [#allocation4], 1
    %10 = vsyncpa %s9, 0
    %11 = vsyncpa [#allocation7], 0
    %s12 = scalar_lea.sflag [#allocation7], 1
    %13 = vsyncpa %s12, 0
    %14 = vsyncpa [#allocation5], 0
    %s15 = scalar_lea.sflag [#allocation5], 1
    %16 = vsyncpa %s15, 0
    loop: start=0, step=1, limit=18
    $region2: #{tpu_custom_call.1} parent=1 // loop_pre_header
      _
    $region3: #{tpu_custom_call.1} parent=1 // loop_header
      %s18 = sphi 0, %s22
      %p19 = scmp.ge.s32.totalorder %s18, 18
      %s25 = sphi 0, %s37
      %s26 = sphi 0, %s33
      %s27 = sphi 0, %s25
      %s28 = sphi 0, %s26
      %s29 = sphi 0, %s27
      %s30 = sphi 0, %s28
      %s42 = sphi 0, %s44
      %s45 = sphi 0, %s42
      %s46 = sphi 0, %s45
      %s62 = sphi 0, %s46
      %s70 = sphi 0, %s72
      %s73 = sphi 0, %s70
      %s74 = sphi 0, %s73
      %s90 = sphi 0, %s74
      %s96 = sphi 0, %s98
      %s99 = sphi 0, %s96
      %s100 = sphi 0, %s99
      %s116 = sphi 0, %s100
      %s122 = sphi 0, %s124
      %s125 = sphi 0, %s122
      %s126 = sphi 0, %s125
      %s142 = sphi 0, %s126
    $region4: #{tpu_custom_call.1} parent=1 // loop_header_branch
      %21 = sbr.rel (%p19) target = $region8
    $region5: #{tpu_custom_call.1} parent=1 // loop_body
      %s23 = ssub.s32 %s18, 1
      %s24 = ssub.s32 %s18, 2
      %s31 = sadd.s32 1, %s26
      %p32 = scmp.ge.s32.totalorder %s31, 4
      %s33 = scalar_select %p32, 0, %s31
      %s34 = sadd.s32 1, %s25
      %s35 = scalar_select %p32, %s34, %s25
      %p36 = scmp.ge.s32.totalorder %s35, 4
      %s37 = scalar_select %p36, 0, %s35
      %s38 = ssub.s32 %s26, %s33
      %s39 = ssub.s32 %s25, %s37
      %s40 = sor.u32 %s38, %s39
      %p41 = scmp.eq.s32.totalorder %s40, 0
      %s43 = sadd.s32 %s42, 1
      %s44 = scalar_select %p41, %s42, %s43
      %p47 = pneg %p41
      %p48 = scmp.eq.s32.totalorder %s18, 15
      %p49 = por %p47, %p48
      %p50 = scmp.ne.s32.totalorder %s42, %s45
      %p51 = scmp.eq.s32.totalorder %s18, 0
      %p52 = por %p50, %p51
      %p53 = scmp.ne.s32.totalorder %s42, %s45
      %p54 = scmp.eq.s32.totalorder %s23, 15
      %p55 = por %p53, %p54
      %p56 = scmp.ne.s32.totalorder %s45, %s46
      %p57 = scmp.eq.s32.totalorder %s23, 0
      %p58 = por %p56, %p57
      %p59 = scmp.ne.s32.totalorder %s45, %s46
      %p60 = scmp.eq.s32.totalorder %s24, 15
      %p61 = por %p59, %p60
      %p63 = scmp.ne.s32.totalorder %s46, %s62
      %p64 = scmp.eq.s32.totalorder %s24, 0
      %p65 = por %p63, %p64
      %s66 = ssub.s32 %s26, %s33
      %s67 = ssub.s32 %s25, %s37
      %s68 = sor.u32 %s66, %s67
      %p69 = scmp.eq.s32.totalorder %s68, 0
      %s71 = sadd.s32 %s70, 1
      %s72 = scalar_select %p69, %s70, %s71
      %p75 = pneg %p69
      %p76 = scmp.eq.s32.totalorder %s18, 15
      %p77 = por %p75, %p76
      %p78 = scmp.ne.s32.totalorder %s70, %s73
      %p79 = scmp.eq.s32.totalorder %s18, 0
      %p80 = por %p78, %p79
      %p81 = scmp.ne.s32.totalorder %s70, %s73
      %p82 = scmp.eq.s32.totalorder %s23, 15
      %p83 = por %p81, %p82
      %p84 = scmp.ne.s32.totalorder %s73, %s74
      %p85 = scmp.eq.s32.totalorder %s23, 0
      %p86 = por %p84, %p85
      %p87 = scmp.ne.s32.totalorder %s73, %s74
      %p88 = scmp.eq.s32.totalorder %s24, 15
      %p89 = por %p87, %p88
      %p91 = scmp.ne.s32.totalorder %s74, %s90
      %p92 = scmp.eq.s32.totalorder %s24, 0
      %p93 = por %p91, %p92
      %s94 = ssub.s32 %s26, %s33
      %p95 = scmp.eq.s32.totalorder %s94, 0
      %s97 = sadd.s32 %s96, 1
      %s98 = scalar_select %p95, %s96, %s97
      %p101 = pneg %p95
      %p102 = scmp.eq.s32.totalorder %s18, 15
      %p103 = por %p101, %p102
      %p104 = scmp.ne.s32.totalorder %s96, %s99
      %p105 = scmp.eq.s32.totalorder %s18, 0
      %p106 = por %p104, %p105
      %p107 = scmp.ne.s32.totalorder %s96, %s99
      %p108 = scmp.eq.s32.totalorder %s23, 15
      %p109 = por %p107, %p108
      %p110 = scmp.ne.s32.totalorder %s99, %s100
      %p111 = scmp.eq.s32.totalorder %s23, 0
      %p112 = por %p110, %p111
      %p113 = scmp.ne.s32.totalorder %s99, %s100
      %p114 = scmp.eq.s32.totalorder %s24, 15
      %p115 = por %p113, %p114
      %p117 = scmp.ne.s32.totalorder %s100, %s116
      %p118 = scmp.eq.s32.totalorder %s24, 0
      %p119 = por %p117, %p118
      %s120 = ssub.s32 %s25, %s37
      %p121 = scmp.eq.s32.totalorder %s120, 0
      %s123 = sadd.s32 %s122, 1
      %s124 = scalar_select %p121, %s122, %s123
      %p127 = pneg %p121
      %p128 = scmp.eq.s32.totalorder %s18, 15
      %p129 = por %p127, %p128
      %p130 = scmp.ne.s32.totalorder %s122, %s125
      %p131 = scmp.eq.s32.totalorder %s18, 0
      %p132 = por %p130, %p131
      %p133 = scmp.ne.s32.totalorder %s122, %s125
      %p134 = scmp.eq.s32.totalorder %s23, 15
      %p135 = por %p133, %p134
      %p136 = scmp.ne.s32.totalorder %s125, %s126
      %p137 = scmp.eq.s32.totalorder %s23, 0
      %p138 = por %p136, %p137
      %p139 = scmp.ne.s32.totalorder %s125, %s126
      %p140 = scmp.eq.s32.totalorder %s24, 15
      %p141 = por %p139, %p140
      %p143 = scmp.ne.s32.totalorder %s126, %s142
      %p144 = scmp.eq.s32.totalorder %s24, 0
      %p145 = por %p143, %p144
      %p146 = scmp.le.s32.totalorder 1, %s18
      %p147 = scmp.lt.s32.totalorder %s18, 17
      %p148 = pnand %p146, %p147
      %p149 = pneg %p148
      // Predicated region
      $region9: #{tpu_custom_call.1} parent=5 // pred_check
        _
      $region10: #{tpu_custom_call.1} parent=5 // pred_check_branch
        %151 = sbr.rel (%p148) target = $region12
      $region11: #{tpu_custom_call.1} parent=5 // pred_region
        %s152 = ssub.s32 %s18, 1
      $region12: #{tpu_custom_call.1} parent=5 // pred_fallthru
        _
      %p153 = scmp.lt.s32.totalorder %s18, 16
      // Predicated region
      $region13: #{tpu_custom_call.1} parent=5 // pred_check
        %p154 = pneg %p153
      $region14: #{tpu_custom_call.1} parent=5 // pred_check_branch
        %156 = sbr.rel (%p154) target = $region16
      $region15: #{tpu_custom_call.1} parent=5 // pred_region
        // Predicated region
        $region17: #{tpu_custom_call.1} parent=15 // pred_check
          %p157 = pneg %p52
        $region18: #{tpu_custom_call.1} parent=15 // pred_check_branch
          %159 = sbr.rel (%p157) target = $region20
        $region19: #{tpu_custom_call.1} parent=15 // pred_region
          %s160 = sand.u32 %s42, 1
          %s161 = scalar_lea.sflag [#allocation4], %s160
          %s162 = sand.u32 %s42, 1
          %s163 = smul.addr %s162, 8
          %s164 = scalar_lea.vmem [#allocation3], %s163
          %s166 = ssub.s32 128, 128
          %167 = vsyncadd %s161, %s166
          %s168 = smul.addr %s26, 4
          %s169 = sadd.s32 %s25, %s168
          %s170 = smul.addr %s169, 128
          %s171 = scalar_lea.hbm %s0, %s170
          %s173 = sshll.u32 %s164, 4
          %s174 = int_to_ptr.vmem [resolvable:$true] %s173
          %176 = dma.hbm_to_vmem [thread:$0]  %s171, 128, %s174, %s161
        $region20: #{tpu_custom_call.1} parent=15 // pred_fallthru
          _
        // Predicated region
        $region21: #{tpu_custom_call.1} parent=15 // pred_check
          %p177 = pneg %p80
        $region22: #{tpu_custom_call.1} parent=15 // pred_check_branch
          %179 = sbr.rel (%p177) target = $region24
        $region23: #{tpu_custom_call.1} parent=15 // pred_region
          %s180 = sand.u32 %s70, 1
          %s181 = scalar_lea.sflag [#allocation7], %s180
          %s182 = sand.u32 %s70, 1
          %s183 = smul.addr %s182, 8
          %s184 = scalar_lea.vmem [#allocation6], %s183
          %s186 = ssub.s32 128, 128
          %187 = vsyncadd %s181, %s186
          %s188 = smul.addr %s26, 4
          %s189 = sadd.s32 %s25, %s188
          %s190 = smul.addr %s189, 128
          %s191 = scalar_lea.hbm %s1, %s190
          %s193 = sshll.u32 %s184, 4
          %s194 = int_to_ptr.vmem [resolvable:$true] %s193
          %196 = dma.hbm_to_vmem [thread:$0]  %s191, 128, %s194, %s181
        $region24: #{tpu_custom_call.1} parent=15 // pred_fallthru
          _
        // Predicated region
        $region25: #{tpu_custom_call.1} parent=15 // pred_check
          %p197 = pneg %p106
        $region26: #{tpu_custom_call.1} parent=15 // pred_check_branch
          %199 = sbr.rel (%p197) target = $region28
        $region27: #{tpu_custom_call.1} parent=15 // pred_region
          %p200 = scmp.lt.s32.totalorder %s26, 3
          %s201 = scalar_select %p200, %s26, 3
          %s202 = smul.addr %s201, 8
          %s203 = scalar_lea.vmem %s2, %s202
        $region28: #{tpu_custom_call.1} parent=15 // pred_fallthru
          _
      $region16: #{tpu_custom_call.1} parent=5 // pred_fallthru
        _
      %p204 = scmp.le.s32.totalorder 1, %s18
      %p205 = scmp.lt.s32.totalorder %s18, 17
      %p206 = pnand %p204, %p205
      %p207 = pneg %p206
      // Predicated region
      $region29: #{tpu_custom_call.1} parent=5 // pred_check
        _
      $region30: #{tpu_custom_call.1} parent=5 // pred_check_branch
        %209 = sbr.rel (%p206) target = $region32
      $region31: #{tpu_custom_call.1} parent=5 // pred_region
        %s210 = ssub.s32 %s18, 1
        %s211 = sand.u32 %s45, 1
        %s212 = scalar_lea.sflag [#allocation4], %s211
        %s213 = sand.u32 %s45, 1
        %s214 = smul.addr %s213, 8
        %s215 = scalar_lea.vmem [#allocation3], %s214
        // Predicated region
        $region33: #{tpu_custom_call.1} parent=31 // pred_check
          %p216 = pneg %p58
        $region34: #{tpu_custom_call.1} parent=31 // pred_check_branch
          %218 = sbr.rel (%p216) target = $region36
        $region35: #{tpu_custom_call.1} parent=31 // pred_region
          %219 = dma.done %s212, 128
        $region36: #{tpu_custom_call.1} parent=31 // pred_fallthru
          _
        %s220 = sand.u32 %s73, 1
        %s221 = scalar_lea.sflag [#allocation7], %s220
        %s222 = sand.u32 %s73, 1
        %s223 = smul.addr %s222, 8
        %s224 = scalar_lea.vmem [#allocation6], %s223
        // Predicated region
        $region37: #{tpu_custom_call.1} parent=31 // pred_check
          %p225 = pneg %p86
        $region38: #{tpu_custom_call.1} parent=31 // pred_check_branch
          %227 = sbr.rel (%p225) target = $region40
        $region39: #{tpu_custom_call.1} parent=31 // pred_region
          %228 = dma.done %s221, 128
        $region40: #{tpu_custom_call.1} parent=31 // pred_fallthru
          _
        %s229 = sand.u32 %s45, 1
        %s230 = scalar_lea.sflag [#allocation4], %s229
        %s231 = sand.u32 %s45, 1
        %s232 = smul.addr %s231, 8
        %s233 = scalar_lea.vmem [#allocation3], %s232
        %p234 = pneg %p58
        %p235 = pneg %p55
        %s236 = sand.u32 %s73, 1
        %s237 = scalar_lea.sflag [#allocation7], %s236
        %s238 = sand.u32 %s73, 1
        %s239 = smul.addr %s238, 8
        %s240 = scalar_lea.vmem [#allocation6], %s239
        %p241 = pneg %p86
        %p242 = pneg %p83
        %p243 = scmp.lt.s32.totalorder %s28, 3
        %s244 = scalar_select %p243, %s28, 3
        %s245 = smul.addr %s244, 8
        %s246 = scalar_lea.vmem %s2, %s245
        %p247 = pneg %p112
        %p248 = pneg %p109
        %p249 = pneg %p138
        %p250 = pneg %p135
        %s251 = sand.u32 %s125, 1
        %s252 = scalar_lea.sflag [#allocation5], %s251
        %s253 = sand.u32 %s125, 1
        %s254 = scalar_lea.vmem [#allocation8], %s253
        %p255 = scmp.lt.s32.totalorder %s28, 3
        %s256 = scalar_select %p255, %s28, 3
        %s257 = smul.addr %s256, 8
        %s258 = scalar_lea.vmem %s2, %s257
        %p259 = scmp.eq.s32.totalorder %s28, 0
        // Predicated region
        $region41: #{tpu_custom_call.1} parent=31 // pred_check
          %p260 = pneg %p259
        $region42: #{tpu_custom_call.1} parent=31 // pred_check_branch
          %262 = sbr.rel (%p260) target = $region44
        $region43: #{tpu_custom_call.1} parent=31 // pred_region
          %263 = vst [vmem:[#allocation2] sm:$0x1] 0.0
        $region44: #{tpu_custom_call.1} parent=31 // pred_fallthru
          _
        %v264 = vld [vmem:[%s215] sm:$0xff]
        %v265 = vld [vmem:[%s224] sm:$0xff]
        %v266 = vld [vmem:[%s258] sm:$0xff]
        %v267 = vsub.f32 %v264, %v265
        %v268 = vmul.f32 %v267, %v267
        %v269 = vsub.f32 1.0, %v266
        %271 = vset.pattern.permute.xlu0 0
        %272 = vperm.xlu0 %271, %v269
        %v273 = vpop.permute.xlu0 %272
        %v275 = vmul.f32 %v273, %v268
        %v276 = vsub.f32 1.0, %v268
        %278 = vset.pattern.permute.xlu0 0
        %279 = vperm.xlu0 %278, %v266
        %v280 = vpop.permute.xlu0 %279
        %v282 = vmul.f32 %v280, %v276
        %v283 = vadd.f32 %v275, %v282
        %v284 = vld [vmem:[#allocation2] sm:$0x1]
        %v285 = vrot.slane %v283, 4
        %v286 = vadd.f32 %v283, %v285
        %v287 = vrot.slane %v286, 2
        %v288 = vadd.f32 %v286, %v287
        %v289 = vrot.slane %v288, 1
        %v290 = vadd.f32 %v288, %v289
        %v291 = vadd.f32 %v284, %v290
        %292 = vst [vmem:[#allocation2] sm:$0x1] %v291
        %p293 = scmp.eq.s32.totalorder %s28, 3
        // Predicated region
        $region45: #{tpu_custom_call.1} parent=31 // pred_check
          %p294 = pneg %p293
        $region46: #{tpu_custom_call.1} parent=31 // pred_check_branch
          %296 = sbr.rel (%p294) target = $region48
        $region47: #{tpu_custom_call.1} parent=31 // pred_region
          %v297 = vld [vmem:[#allocation2] sm:$0x1]
          %298 = vst [vmem:[%s254] sm:$0x1] %v297
        $region48: #{tpu_custom_call.1} parent=31 // pred_fallthru
          _
        %s299 = sand.u32 %s125, 1
        %s300 = scalar_lea.sflag [#allocation5], %s299
        %s301 = sand.u32 %s125, 1
        %s302 = scalar_lea.vmem [#allocation8], %s301
        // Predicated region
        $region49: #{tpu_custom_call.1} parent=31 // pred_check
          %p303 = pneg %p135
        $region50: #{tpu_custom_call.1} parent=31 // pred_check_branch
          %305 = sbr.rel (%p303) target = $region52
        $region51: #{tpu_custom_call.1} parent=31 // pred_region
          %s307 = ssub.s32 16, 16
          %308 = vsyncadd %s300, %s307
          %s309 = smul.addr %s27, 16
          %s310 = scalar_lea.hbm %s3, %s309
          %s312 = sshll.u32 %s302, 4
          %s313 = int_to_ptr.vmem [resolvable:$true] %s312
          %315 = dma.vmem_to_hbm [thread:$0]  %s313, 16, %s310, %s300
        $region52: #{tpu_custom_call.1} parent=31 // pred_fallthru
          _
      $region32: #{tpu_custom_call.1} parent=5 // pred_fallthru
        _
      %p316 = scmp.le.s32.totalorder 2, %s18
      // Predicated region
      $region53: #{tpu_custom_call.1} parent=5 // pred_check
        %p317 = pneg %p316
      $region54: #{tpu_custom_call.1} parent=5 // pred_check_branch
        %319 = sbr.rel (%p317) target = $region56
      $region55: #{tpu_custom_call.1} parent=5 // pred_region
        %s320 = ssub.s32 %s18, 2
        // Predicated region
        $region57: #{tpu_custom_call.1} parent=55 // pred_check
          %p321 = pneg %p141
        $region58: #{tpu_custom_call.1} parent=55 // pred_check_branch
          %323 = sbr.rel (%p321) target = $region60
        $region59: #{tpu_custom_call.1} parent=55 // pred_region
          %s324 = sand.u32 %s126, 1
          %s325 = scalar_lea.sflag [#allocation5], %s324
          %s326 = sand.u32 %s126, 1
          %s327 = scalar_lea.vmem [#allocation8], %s326
          %328 = dma.done %s325, 16
        $region60: #{tpu_custom_call.1} parent=55 // pred_fallthru
          _
      $region56: #{tpu_custom_call.1} parent=5 // pred_fallthru
        _
    $region6: #{tpu_custom_call.1} parent=1 // loop_footer
      %s22 = sadd.s32 1, %s18
    $region7: #{tpu_custom_call.1} parent=1 // loop_footer_branch
      %17 = sbr.rel target = $region3
    $region8: #{tpu_custom_call.1} parent=1 // loop_exit
      _
    %329 = vsyncpa [#allocation4], 1
    %s330 = scalar_lea.sflag [#allocation4], 1
    %331 = vsyncpa %s330, 1
    %332 = vsyncpa [#allocation7], 1
    %s333 = scalar_lea.sflag [#allocation7], 1
    %334 = vsyncpa %s333, 1
    %335 = vsyncpa [#allocation5], 1
    %s336 = scalar_lea.sflag [#allocation5], 1
    %337 = vsyncpa %s336, 1

</llo_original>
